<compile_context>
chip_gen: v7x
topology: tpu7x:2x2x1
jax: 0.10.0
libtpu: 0.0.40
codegen_flags: <defaults>
</compile_context>

<pallas_src>
import functools

import jax
import jax.numpy as jnp
from jax.experimental import pallas as pl
from jax.experimental.pallas import tpu as pltpu

BN_EPS = 1e-5


def _sae_fused_kernel(*refs, n_layers, n_enc, cfg):
    """refs = (x, w0, p0, w1, p1, ..., w_{L-1}, p_{L-1}, enc_out, dec_out)

    w_i : (K_i, N_i) bf16 weight (PyTorch Linear.weight, transposed)
    p_i : (3, N_i) f32 packed [bias; bn_gamma; bn_beta]
    cfg : static python tuple of (use_bn, activation) per layer
    """
    x_ref = refs[0]
    enc_out_ref = refs[1 + 2 * n_layers]
    dec_out_ref = refs[2 + 2 * n_layers]

    h = x_ref[...]                                        # (B, input_dim) f32
    for i in range(n_layers):
        w_ref = refs[1 + 2 * i]
        p_ref = refs[2 + 2 * i]
        use_bn, act = cfg[i]
        p = p_ref[...]                                    # (3, N) f32

        # bf16 x bf16 -> f32 accumulate on the MXU.
        y = jnp.dot(h.astype(jnp.bfloat16), w_ref[...],
                    preferred_element_type=jnp.float32)   # (B, N) f32

        if use_bn:
            # BatchNorm1d, training mode (biased per-feature batch statistics).
            # The Linear bias is cancelled by the mean subtraction, so it is
            # never added.  Fold BN into one scale + shift per feature.
            mean = jnp.mean(y, axis=0, keepdims=True)                  # (1, N)
            var = jnp.mean((y - mean) ** 2, axis=0, keepdims=True)     # (1, N)
            s = p[1:2, :] * jax.lax.rsqrt(var + BN_EPS)                # gamma * rstd
            t = p[2:3, :] - mean * s                                   # beta - mean*s
            y = y * s + t
        else:
            y = y + p[0:1, :]                              # plain Linear bias

        if act == "relu":
            y = jnp.maximum(y, 0.0)
        elif act == "sigmoid":
            y = jax.nn.sigmoid(y)

        h = y
        if i == n_enc - 1:                                 # latent after encoder head
            enc_out_ref[...] = h.astype(enc_out_ref.dtype)
    dec_out_ref[...] = h.astype(dec_out_ref.dtype)


def sae_forward(x, enc_params, dec_params):
    """Whole autoencoder forward pass in one fused pallas_call."""
    params = list(enc_params) + list(dec_params)
    n_layers = len(params)
    n_enc = len(enc_params)
    cfg = tuple((p["use_bn"], p["activation"]) for p in params)

    B = x.shape[0]
    latent_dim = enc_params[-1]["w"].shape[1]
    out_dim = dec_params[-1]["w"].shape[1]

    flat_inputs = [x]
    for p in params:
        flat_inputs.append(p["w"].astype(jnp.bfloat16))   # halve weight HBM traffic
        flat_inputs.append(
            jnp.stack([p["b"], p["gamma"], p["beta"]], axis=0))  # packed (3, N)

    kernel = functools.partial(
        _sae_fused_kernel, n_layers=n_layers, n_enc=n_enc, cfg=cfg)

    vmem_spec = pl.BlockSpec(memory_space=pltpu.MemorySpace.VMEM)
    encoded, decoded = pl.pallas_call(
        kernel,
        out_shape=(jax.ShapeDtypeStruct((B, latent_dim), jnp.float32),
                   jax.ShapeDtypeStruct((B, out_dim), jnp.float32)),
        in_specs=[vmem_spec] * len(flat_inputs),
        out_specs=(vmem_spec, vmem_spec),
    )(*flat_inputs)
    return encoded, decoded
    # TODO(synk): if batch grows to thousands of rows, tile B with a grid axis
    # and a two-pass / Welford cross-tile BN reduction; re-derive tile sizes for
    # v7x's 64 MiB VMEM.


# ---- parameter construction (mirrors PyTorch defaults) ---------------------
def init_linear(key, in_dim, out_dim):
    # PyTorch nn.Linear init: uniform(-1/sqrt(fan_in), 1/sqrt(fan_in)).
    kw, kb = jax.random.split(key)
    bound = 1.0 / jnp.sqrt(jnp.float32(in_dim))
    w = jax.random.uniform(kw, (in_dim, out_dim), jnp.float32, -bound, bound)
    b = jax.random.uniform(kb, (out_dim,), jnp.float32, -bound, bound)
    return w, b


def build_mlp_params(key, sizes):
    """sizes e.g. [256, 128, 128, 32]. Layer i: Linear(sizes[i]->sizes[i+1]);
    BN + ReLU for every layer except the last; final layer followed by Sigmoid
    (matches get_sequential(...)[:-2] + nn.Sigmoid())."""
    params = []
    n_layers = len(sizes) - 1
    keys = jax.random.split(key, n_layers)
    for i in range(n_layers):
        w, b = init_linear(keys[i], sizes[i], sizes[i + 1])
        gamma = jnp.ones((sizes[i + 1],), jnp.float32)    # BatchNorm1d default weight
        beta = jnp.zeros((sizes[i + 1],), jnp.float32)    # BatchNorm1d default bias
        is_last = i == n_layers - 1
        params.append(
            dict(w=w, b=b, gamma=gamma, beta=beta,
                 use_bn=not is_last,
                 activation="sigmoid" if is_last else "relu"))
    return params


# ---- pure-JAX reference (PyTorch op order: bias add, then BN) ---------------
def ref_mlp(x, params):
    for p in params:
        y = jnp.dot(x.astype(jnp.bfloat16), p["w"].astype(jnp.bfloat16),
                    preferred_element_type=jnp.float32) + p["b"][None, :]
        if p["use_bn"]:
            mean = jnp.mean(y, axis=0, keepdims=True)
            var = jnp.mean((y - mean) ** 2, axis=0, keepdims=True)
            y = (y - mean) * jax.lax.rsqrt(var + BN_EPS) * p["gamma"][None, :] \
                + p["beta"][None, :]
        if p["activation"] == "relu":
            y = jnp.maximum(y, 0.0)
        elif p["activation"] == "sigmoid":
            y = jax.nn.sigmoid(y)
        x = y
    return x


if __name__ == "__main__":
    # Small, module-consistent shapes: sAE(input_dim=256, latent_dim=32, layers=[128, 128])
    input_dim, latent_dim, layers = 256, 32, [128, 128]
    batch = 8

    enc_sizes = [input_dim] + layers + [latent_dim]
    dec_sizes = enc_sizes[::-1]

    key = jax.random.PRNGKey(0)
    k_x, k_enc, k_dec = jax.random.split(key, 3)
    x = jax.random.normal(k_x, (batch, input_dim), jnp.float32)
    enc_params = build_mlp_params(k_enc, enc_sizes)
    dec_params = build_mlp_params(k_dec, dec_sizes)

    encoded, decoded = sae_forward(x, enc_params, dec_params)
    jax.block_until_ready((encoded, decoded))

    # Sanity check against the pure-JAX reference (PyTorch-ordered math).
    enc_ref = ref_mlp(x, enc_params)
    dec_ref = ref_mlp(enc_ref, dec_params)
    assert encoded.shape == (batch, latent_dim)
    assert decoded.shape == (batch, input_dim)
    assert jnp.allclose(encoded, enc_ref, atol=2e-3, rtol=2e-3)
    assert jnp.allclose(decoded, dec_ref, atol=2e-3, rtol=2e-3)

    print("KERNEL_OK")
</pallas_src>

<mosaic_0001>
module attributes {stable_mosaic.version = 11 : i64} {
  func.func @_sae_fused_kernel(%arg0: memref<8x256xf32, #tpu.memory_space<vmem>>, %arg1: memref<256x128xbf16, #tpu.memory_space<vmem>>, %arg2: memref<3x128xf32, #tpu.memory_space<vmem>>, %arg3: memref<128x128xbf16, #tpu.memory_space<vmem>>, %arg4: memref<3x128xf32, #tpu.memory_space<vmem>>, %arg5: memref<128x32xbf16, #tpu.memory_space<vmem>>, %arg6: memref<3x32xf32, #tpu.memory_space<vmem>>, %arg7: memref<32x128xbf16, #tpu.memory_space<vmem>>, %arg8: memref<3x128xf32, #tpu.memory_space<vmem>>, %arg9: memref<128x128xbf16, #tpu.memory_space<vmem>>, %arg10: memref<3x128xf32, #tpu.memory_space<vmem>>, %arg11: memref<128x256xbf16, #tpu.memory_space<vmem>>, %arg12: memref<3x256xf32, #tpu.memory_space<vmem>>, %arg13: memref<8x32xf32, #tpu.memory_space<vmem>>, %arg14: memref<8x256xf32, #tpu.memory_space<vmem>>) attributes {dimension_semantics = [], scalar_prefetch = 0 : i64, scratch_operands = 0 : i64, tpu.core_type = #tpu.core_type<tc>} {
    %c0 = arith.constant 0 : index
    %c0_0 = arith.constant 0 : index
    %0 = vector.load %arg0[%c0, %c0_0] : memref<8x256xf32, #tpu.memory_space<vmem>>, vector<8x256xf32>
    %c0_1 = arith.constant 0 : index
    %c0_2 = arith.constant 0 : index
    %1 = vector.load %arg2[%c0_1, %c0_2] : memref<3x128xf32, #tpu.memory_space<vmem>>, vector<3x128xf32>
    %2 = arith.truncf %0 : vector<8x256xf32> to vector<8x256xbf16>
    %c0_3 = arith.constant 0 : index
    %c0_4 = arith.constant 0 : index
    %3 = vector.load %arg1[%c0_3, %c0_4] : memref<256x128xbf16, #tpu.memory_space<vmem>>, vector<256x128xbf16>
    %cst = arith.constant dense<0.000000e+00> : vector<8x128xf32>
    %4 = tpu.matmul %2, %3, %cst {dimension_numbers = #tpu.dot_dimension_numbers<[1], [0], [0], [1], [0, 0, 1, 1], [], []>} : vector<8x256xbf16>, vector<256x128xbf16>, vector<8x128xf32> -> vector<8x128xf32>
    %cst_5 = arith.constant dense<0.000000e+00> : vector<128xf32>
    %5 = vector.multi_reduction <add>, %4, %cst_5 [0] : vector<8x128xf32> to vector<128xf32>
    %6 = vector.shape_cast %5 : vector<128xf32> to vector<1x128xf32>
    %cst_6 = arith.constant 8.000000e+00 : f32
    %7 = vector.broadcast %cst_6 : f32 to vector<1x128xf32>
    %8 = arith.divf %6, %7 : vector<1x128xf32>
    %9 = vector.broadcast %8 : vector<1x128xf32> to vector<8x128xf32>
    %10 = arith.subf %4, %9 : vector<8x128xf32>
    %11 = arith.mulf %10, %10 : vector<8x128xf32>
    %cst_7 = arith.constant dense<0.000000e+00> : vector<128xf32>
    %12 = vector.multi_reduction <add>, %11, %cst_7 [0] : vector<8x128xf32> to vector<128xf32>
    %13 = vector.shape_cast %12 : vector<128xf32> to vector<1x128xf32>
    %cst_8 = arith.constant 8.000000e+00 : f32
    %14 = vector.broadcast %cst_8 : f32 to vector<1x128xf32>
    %15 = arith.divf %13, %14 : vector<1x128xf32>
    %16 = vector.extract_strided_slice %1 {offsets = [1, 0], sizes = [1, 128], strides = [1, 1]} : vector<3x128xf32> to vector<1x128xf32>
    %cst_9 = arith.constant 9.99999974E-6 : f32
    %17 = vector.broadcast %cst_9 : f32 to vector<1x128xf32>
    %18 = arith.addf %15, %17 : vector<1x128xf32>
    %19 = math.rsqrt %18 : vector<1x128xf32>
    %20 = arith.mulf %16, %19 : vector<1x128xf32>
    %21 = vector.extract_strided_slice %1 {offsets = [2, 0], sizes = [1, 128], strides = [1, 1]} : vector<3x128xf32> to vector<1x128xf32>
    %22 = arith.mulf %8, %20 : vector<1x128xf32>
    %23 = arith.subf %21, %22 : vector<1x128xf32>
    %24 = vector.broadcast %20 : vector<1x128xf32> to vector<8x128xf32>
    %25 = arith.mulf %4, %24 : vector<8x128xf32>
    %26 = vector.broadcast %23 : vector<1x128xf32> to vector<8x128xf32>
    %27 = arith.addf %25, %26 : vector<8x128xf32>
    %cst_10 = arith.constant 0.000000e+00 : f32
    %28 = vector.broadcast %cst_10 : f32 to vector<8x128xf32>
    %29 = arith.maximumf %27, %28 : vector<8x128xf32>
    %c0_11 = arith.constant 0 : index
    %c0_12 = arith.constant 0 : index
    %30 = vector.load %arg4[%c0_11, %c0_12] : memref<3x128xf32, #tpu.memory_space<vmem>>, vector<3x128xf32>
    %31 = arith.truncf %29 : vector<8x128xf32> to vector<8x128xbf16>
    %c0_13 = arith.constant 0 : index
    %c0_14 = arith.constant 0 : index
    %32 = vector.load %arg3[%c0_13, %c0_14] : memref<128x128xbf16, #tpu.memory_space<vmem>>, vector<128x128xbf16>
    %cst_15 = arith.constant dense<0.000000e+00> : vector<8x128xf32>
    %33 = tpu.matmul %31, %32, %cst_15 {dimension_numbers = #tpu.dot_dimension_numbers<[1], [0], [0], [1], [0, 0, 1, 1], [], []>} : vector<8x128xbf16>, vector<128x128xbf16>, vector<8x128xf32> -> vector<8x128xf32>
    %cst_16 = arith.constant dense<0.000000e+00> : vector<128xf32>
    %34 = vector.multi_reduction <add>, %33, %cst_16 [0] : vector<8x128xf32> to vector<128xf32>
    %35 = vector.shape_cast %34 : vector<128xf32> to vector<1x128xf32>
    %cst_17 = arith.constant 8.000000e+00 : f32
    %36 = vector.broadcast %cst_17 : f32 to vector<1x128xf32>
    %37 = arith.divf %35, %36 : vector<1x128xf32>
    %38 = vector.broadcast %37 : vector<1x128xf32> to vector<8x128xf32>
    %39 = arith.subf %33, %38 : vector<8x128xf32>
    %40 = arith.mulf %39, %39 : vector<8x128xf32>
    %cst_18 = arith.constant dense<0.000000e+00> : vector<128xf32>
    %41 = vector.multi_reduction <add>, %40, %cst_18 [0] : vector<8x128xf32> to vector<128xf32>
    %42 = vector.shape_cast %41 : vector<128xf32> to vector<1x128xf32>
    %cst_19 = arith.constant 8.000000e+00 : f32
    %43 = vector.broadcast %cst_19 : f32 to vector<1x128xf32>
    %44 = arith.divf %42, %43 : vector<1x128xf32>
    %45 = vector.extract_strided_slice %30 {offsets = [1, 0], sizes = [1, 128], strides = [1, 1]} : vector<3x128xf32> to vector<1x128xf32>
    %cst_20 = arith.constant 9.99999974E-6 : f32
    %46 = vector.broadcast %cst_20 : f32 to vector<1x128xf32>
    %47 = arith.addf %44, %46 : vector<1x128xf32>
    %48 = math.rsqrt %47 : vector<1x128xf32>
    %49 = arith.mulf %45, %48 : vector<1x128xf32>
    %50 = vector.extract_strided_slice %30 {offsets = [2, 0], sizes = [1, 128], strides = [1, 1]} : vector<3x128xf32> to vector<1x128xf32>
    %51 = arith.mulf %37, %49 : vector<1x128xf32>
    %52 = arith.subf %50, %51 : vector<1x128xf32>
    %53 = vector.broadcast %49 : vector<1x128xf32> to vector<8x128xf32>
    %54 = arith.mulf %33, %53 : vector<8x128xf32>
    %55 = vector.broadcast %52 : vector<1x128xf32> to vector<8x128xf32>
    %56 = arith.addf %54, %55 : vector<8x128xf32>
    %cst_21 = arith.constant 0.000000e+00 : f32
    %57 = vector.broadcast %cst_21 : f32 to vector<8x128xf32>
    %58 = arith.maximumf %56, %57 : vector<8x128xf32>
    %c0_22 = arith.constant 0 : index
    %c0_23 = arith.constant 0 : index
    %59 = vector.load %arg6[%c0_22, %c0_23] : memref<3x32xf32, #tpu.memory_space<vmem>>, vector<3x32xf32>
    %60 = arith.truncf %58 : vector<8x128xf32> to vector<8x128xbf16>
    %c0_24 = arith.constant 0 : index
    %c0_25 = arith.constant 0 : index
    %61 = vector.load %arg5[%c0_24, %c0_25] : memref<128x32xbf16, #tpu.memory_space<vmem>>, vector<128x32xbf16>
    %cst_26 = arith.constant dense<0.000000e+00> : vector<8x32xf32>
    %62 = tpu.matmul %60, %61, %cst_26 {dimension_numbers = #tpu.dot_dimension_numbers<[1], [0], [0], [1], [0, 0, 1, 1], [], []>} : vector<8x128xbf16>, vector<128x32xbf16>, vector<8x32xf32> -> vector<8x32xf32>
    %63 = vector.extract_strided_slice %59 {offsets = [0, 0], sizes = [1, 32], strides = [1, 1]} : vector<3x32xf32> to vector<1x32xf32>
    %64 = vector.broadcast %63 : vector<1x32xf32> to vector<8x32xf32>
    %65 = arith.addf %62, %64 : vector<8x32xf32>
    %66 = arith.negf %65 : vector<8x32xf32>
    %67 = math.exp %66 : vector<8x32xf32>
    %cst_27 = arith.constant 1.000000e+00 : f32
    %68 = vector.broadcast %cst_27 : f32 to vector<8x32xf32>
    %69 = arith.addf %68, %67 : vector<8x32xf32>
    %70 = arith.divf %68, %69 : vector<8x32xf32>
    %c0_28 = arith.constant 0 : index
    %c0_29 = arith.constant 0 : index
    %71 = vector.load %arg13[%c0_28, %c0_29] : memref<8x32xf32, #tpu.memory_space<vmem>>, vector<8x32xf32>
    tpu.vector_store %arg13[%c0_28, %c0_29], %70 {strides = array<i32>} : memref<8x32xf32, #tpu.memory_space<vmem>>, vector<8x32xf32>,
    %c0_30 = arith.constant 0 : index
    %c0_31 = arith.constant 0 : index
    %72 = vector.load %arg8[%c0_30, %c0_31] : memref<3x128xf32, #tpu.memory_space<vmem>>, vector<3x128xf32>
    %73 = arith.truncf %70 : vector<8x32xf32> to vector<8x32xbf16>
    %c0_32 = arith.constant 0 : index
    %c0_33 = arith.constant 0 : index
    %74 = vector.load %arg7[%c0_32, %c0_33] : memref<32x128xbf16, #tpu.memory_space<vmem>>, vector<32x128xbf16>
    %cst_34 = arith.constant dense<0.000000e+00> : vector<8x128xf32>
    %75 = tpu.matmul %73, %74, %cst_34 {dimension_numbers = #tpu.dot_dimension_numbers<[1], [0], [0], [1], [0, 0, 1, 1], [], []>} : vector<8x32xbf16>, vector<32x128xbf16>, vector<8x128xf32> -> vector<8x128xf32>
    %cst_35 = arith.constant dense<0.000000e+00> : vector<128xf32>
    %76 = vector.multi_reduction <add>, %75, %cst_35 [0] : vector<8x128xf32> to vector<128xf32>
    %77 = vector.shape_cast %76 : vector<128xf32> to vector<1x128xf32>
    %cst_36 = arith.constant 8.000000e+00 : f32
    %78 = vector.broadcast %cst_36 : f32 to vector<1x128xf32>
    %79 = arith.divf %77, %78 : vector<1x128xf32>
    %80 = vector.broadcast %79 : vector<1x128xf32> to vector<8x128xf32>
    %81 = arith.subf %75, %80 : vector<8x128xf32>
    %82 = arith.mulf %81, %81 : vector<8x128xf32>
    %cst_37 = arith.constant dense<0.000000e+00> : vector<128xf32>
    %83 = vector.multi_reduction <add>, %82, %cst_37 [0] : vector<8x128xf32> to vector<128xf32>
    %84 = vector.shape_cast %83 : vector<128xf32> to vector<1x128xf32>
    %cst_38 = arith.constant 8.000000e+00 : f32
    %85 = vector.broadcast %cst_38 : f32 to vector<1x128xf32>
    %86 = arith.divf %84, %85 : vector<1x128xf32>
    %87 = vector.extract_strided_slice %72 {offsets = [1, 0], sizes = [1, 128], strides = [1, 1]} : vector<3x128xf32> to vector<1x128xf32>
    %cst_39 = arith.constant 9.99999974E-6 : f32
    %88 = vector.broadcast %cst_39 : f32 to vector<1x128xf32>
    %89 = arith.addf %86, %88 : vector<1x128xf32>
    %90 = math.rsqrt %89 : vector<1x128xf32>
    %91 = arith.mulf %87, %90 : vector<1x128xf32>
    %92 = vector.extract_strided_slice %72 {offsets = [2, 0], sizes = [1, 128], strides = [1, 1]} : vector<3x128xf32> to vector<1x128xf32>
    %93 = arith.mulf %79, %91 : vector<1x128xf32>
    %94 = arith.subf %92, %93 : vector<1x128xf32>
    %95 = vector.broadcast %91 : vector<1x128xf32> to vector<8x128xf32>
    %96 = arith.mulf %75, %95 : vector<8x128xf32>
    %97 = vector.broadcast %94 : vector<1x128xf32> to vector<8x128xf32>
    %98 = arith.addf %96, %97 : vector<8x128xf32>
    %cst_40 = arith.constant 0.000000e+00 : f32
    %99 = vector.broadcast %cst_40 : f32 to vector<8x128xf32>
    %100 = arith.maximumf %98, %99 : vector<8x128xf32>
    %c0_41 = arith.constant 0 : index
    %c0_42 = arith.constant 0 : index
    %101 = vector.load %arg10[%c0_41, %c0_42] : memref<3x128xf32, #tpu.memory_space<vmem>>, vector<3x128xf32>
    %102 = arith.truncf %100 : vector<8x128xf32> to vector<8x128xbf16>
    %c0_43 = arith.constant 0 : index
    %c0_44 = arith.constant 0 : index
    %103 = vector.load %arg9[%c0_43, %c0_44] : memref<128x128xbf16, #tpu.memory_space<vmem>>, vector<128x128xbf16>
    %cst_45 = arith.constant dense<0.000000e+00> : vector<8x128xf32>
    %104 = tpu.matmul %102, %103, %cst_45 {dimension_numbers = #tpu.dot_dimension_numbers<[1], [0], [0], [1], [0, 0, 1, 1], [], []>} : vector<8x128xbf16>, vector<128x128xbf16>, vector<8x128xf32> -> vector<8x128xf32>
    %cst_46 = arith.constant dense<0.000000e+00> : vector<128xf32>
    %105 = vector.multi_reduction <add>, %104, %cst_46 [0] : vector<8x128xf32> to vector<128xf32>
    %106 = vector.shape_cast %105 : vector<128xf32> to vector<1x128xf32>
    %cst_47 = arith.constant 8.000000e+00 : f32
    %107 = vector.broadcast %cst_47 : f32 to vector<1x128xf32>
    %108 = arith.divf %106, %107 : vector<1x128xf32>
    %109 = vector.broadcast %108 : vector<1x128xf32> to vector<8x128xf32>
    %110 = arith.subf %104, %109 : vector<8x128xf32>
    %111 = arith.mulf %110, %110 : vector<8x128xf32>
    %cst_48 = arith.constant dense<0.000000e+00> : vector<128xf32>
    %112 = vector.multi_reduction <add>, %111, %cst_48 [0] : vector<8x128xf32> to vector<128xf32>
    %113 = vector.shape_cast %112 : vector<128xf32> to vector<1x128xf32>
    %cst_49 = arith.constant 8.000000e+00 : f32
    %114 = vector.broadcast %cst_49 : f32 to vector<1x128xf32>
    %115 = arith.divf %113, %114 : vector<1x128xf32>
    %116 = vector.extract_strided_slice %101 {offsets = [1, 0], sizes = [1, 128], strides = [1, 1]} : vector<3x128xf32> to vector<1x128xf32>
    %cst_50 = arith.constant 9.99999974E-6 : f32
    %117 = vector.broadcast %cst_50 : f32 to vector<1x128xf32>
    %118 = arith.addf %115, %117 : vector<1x128xf32>
    %119 = math.rsqrt %118 : vector<1x128xf32>
    %120 = arith.mulf %116, %119 : vector<1x128xf32>
    %121 = vector.extract_strided_slice %101 {offsets = [2, 0], sizes = [1, 128], strides = [1, 1]} : vector<3x128xf32> to vector<1x128xf32>
    %122 = arith.mulf %108, %120 : vector<1x128xf32>
    %123 = arith.subf %121, %122 : vector<1x128xf32>
    %124 = vector.broadcast %120 : vector<1x128xf32> to vector<8x128xf32>
    %125 = arith.mulf %104, %124 : vector<8x128xf32>
    %126 = vector.broadcast %123 : vector<1x128xf32> to vector<8x128xf32>
    %127 = arith.addf %125, %126 : vector<8x128xf32>
    %cst_51 = arith.constant 0.000000e+00 : f32
    %128 = vector.broadcast %cst_51 : f32 to vector<8x128xf32>
    %129 = arith.maximumf %127, %128 : vector<8x128xf32>
    %c0_52 = arith.constant 0 : index
    %c0_53 = arith.constant 0 : index
    %130 = vector.load %arg12[%c0_52, %c0_53] : memref<3x256xf32, #tpu.memory_space<vmem>>, vector<3x256xf32>
    %131 = arith.truncf %129 : vector<8x128xf32> to vector<8x128xbf16>
    %c0_54 = arith.constant 0 : index
    %c0_55 = arith.constant 0 : index
    %132 = vector.load %arg11[%c0_54, %c0_55] : memref<128x256xbf16, #tpu.memory_space<vmem>>, vector<128x256xbf16>
    %cst_56 = arith.constant dense<0.000000e+00> : vector<8x256xf32>
    %133 = tpu.matmul %131, %132, %cst_56 {dimension_numbers = #tpu.dot_dimension_numbers<[1], [0], [0], [1], [0, 0, 1, 1], [], []>} : vector<8x128xbf16>, vector<128x256xbf16>, vector<8x256xf32> -> vector<8x256xf32>
    %134 = vector.extract_strided_slice %130 {offsets = [0, 0], sizes = [1, 256], strides = [1, 1]} : vector<3x256xf32> to vector<1x256xf32>
    %135 = vector.broadcast %134 : vector<1x256xf32> to vector<8x256xf32>
    %136 = arith.addf %133, %135 : vector<8x256xf32>
    %137 = arith.negf %136 : vector<8x256xf32>
    %138 = math.exp %137 : vector<8x256xf32>
    %cst_57 = arith.constant 1.000000e+00 : f32
    %139 = vector.broadcast %cst_57 : f32 to vector<8x256xf32>
    %140 = arith.addf %139, %138 : vector<8x256xf32>
    %141 = arith.divf %139, %140 : vector<8x256xf32>
    %c0_58 = arith.constant 0 : index
    %c0_59 = arith.constant 0 : index
    %142 = vector.load %arg14[%c0_58, %c0_59] : memref<8x256xf32, #tpu.memory_space<vmem>>, vector<8x256xf32>
    tpu.vector_store %arg14[%c0_58, %c0_59], %141 {strides = array<i32>} : memref<8x256xf32, #tpu.memory_space<vmem>>, vector<8x256xf32>,
    return
  }
}

</mosaic_0001>

<llo_original>
// kernel: tpu_custom_call.1
$region0: #{tpu_custom_call.1}
  #allocation0 [shape = 'u32[]', space=smem, size = 0x4, offset = 0x4, fixed_abs, tag = 'smem constant byte address 0x4 - core index']
  #allocation1 [shape = 'u32[144,128]{1,0:T(1,128)}', space=vmem, size = 0x12000, scoped, tag = 'internal scratch']
  %s0 = inlined_call_operand.vmem [shape: f32[8,256], index: 0, kind: input, shape index: {}]
  %s1 = inlined_call_operand.hbm [shape: bf16[256,128], index: 1, kind: input, shape index: {}]
  %s2 = inlined_call_operand.hbm [shape: f32[3,128], index: 2, kind: input, shape index: {}]
  %s3 = inlined_call_operand.vmem [shape: bf16[128,128], index: 3, kind: input, shape index: {}]
  %s4 = inlined_call_operand.hbm [shape: f32[3,128], index: 4, kind: input, shape index: {}]
  %s5 = inlined_call_operand.vmem [shape: bf16[128,32], index: 5, kind: input, shape index: {}]
  %s6 = inlined_call_operand.hbm [shape: f32[3,32], index: 6, kind: input, shape index: {}]
  %s7 = inlined_call_operand.hbm [shape: bf16[32,128], index: 7, kind: input, shape index: {}]
  %s8 = inlined_call_operand.vmem [shape: f32[3,128], index: 8, kind: input, shape index: {}]
  %s9 = inlined_call_operand.hbm [shape: bf16[128,128], index: 9, kind: input, shape index: {}]
  %s10 = inlined_call_operand.vmem [shape: f32[3,128], index: 10, kind: input, shape index: {}]
  %s11 = inlined_call_operand.hbm [shape: bf16[128,256], index: 11, kind: input, shape index: {}]
  %s12 = inlined_call_operand.vmem [shape: f32[3,256], index: 12, kind: input, shape index: {}]
  %s13 = inlined_call_operand.hbm [shape: f32[8,32], index: 13, kind: output, shape index: {0}]
  %s14 = inlined_call_operand.hbm [shape: f32[8,256], index: 14, kind: output, shape index: {1}]
  %15 = xla_tuple %s13, %s14
  %s16 = sld [smem:[#allocation0]]
  $region98: #{tpu_custom_call.1} parent=0
    _
  %s18 = ssub.s32 1, %s16
  %s19 = scalar_select 0, %s18, %s16
  $region1: #{tpu_custom_call.1} parent=0
    #allocation2 [shape = 'u8[65536]{0}', space=vmem, size = 0x10000, scoped, tag = 'input window, operand 1, single buffered']
    #allocation3 [shape = 's32[1]{0}', space=sflag, size = 0x4, scoped, tag = 'scoped memory for tpu_custom_call.1']
    #allocation4 [shape = 's32[1]{0}', space=sflag, size = 0x4, scoped, tag = 'scoped memory for tpu_custom_call.1']
    #allocation5 [shape = 'u8[2048]{0}', space=vmem, size = 0x800, scoped, tag = 'input window, operand 2, single buffered']
    #allocation6 [shape = 's32[1]{0}', space=sflag, size = 0x4, scoped, tag = 'scoped memory for tpu_custom_call.1']
    #allocation7 [shape = 'u8[2048]{0}', space=vmem, size = 0x800, scoped, tag = 'input window, operand 4, single buffered']
    #allocation8 [shape = 'u8[2048]{0}', space=vmem, size = 0x800, scoped, tag = 'input window, operand 6, single buffered']
    #allocation9 [shape = 's32[1]{0}', space=sflag, size = 0x4, scoped, tag = 'scoped memory for tpu_custom_call.1']
    #allocation10 [shape = 'u8[8192]{0}', space=vmem, size = 0x2000, scoped, tag = 'input window, operand 7, single buffered']
    #allocation11 [shape = 'u8[32768]{0}', space=vmem, size = 0x8000, scoped, tag = 'input window, operand 9, single buffered']
    #allocation12 [shape = 's32[1]{0}', space=sflag, size = 0x4, scoped, tag = 'scoped memory for tpu_custom_call.1']
    #allocation13 [shape = 'u8[65536]{0}', space=vmem, size = 0x10000, scoped, tag = 'input window, operand 11, single buffered']
    #allocation14 [shape = 'u8[4096]{0}', space=vmem, size = 0x1000, scoped, tag = 'output window, operand 0, single buffered']
    #allocation15 [shape = 'u8[8192]{0}', space=vmem, size = 0x2000, scoped, tag = 'output window, operand 1, single buffered']
    #allocation16 [shape = 's32[1]{0}', space=sflag, size = 0x4, scoped, tag = 'scoped memory for tpu_custom_call.1']
    %20 = vsyncpa [#allocation3], 0
    %21 = vsyncpa [#allocation6], 0
    %22 = vsyncpa [#allocation9], 0
    %23 = vsyncpa [#allocation12], 0
    %24 = vsyncpa [#allocation4], 0
    %25 = vsyncpa [#allocation16], 0
    // Predicated region
    $region2: #{tpu_custom_call.1} parent=1 // pred_check
      _
    $region3: #{tpu_custom_call.1} parent=1 // pred_check_branch
      %27 = sbr.rel (0) target = $region5
    $region4: #{tpu_custom_call.1} parent=1 // pred_region
      _
    $region5: #{tpu_custom_call.1} parent=1 // pred_fallthru
      _
    // Predicated region
    $region6: #{tpu_custom_call.1} parent=1 // pred_check
      _
    $region7: #{tpu_custom_call.1} parent=1 // pred_check_branch
      %29 = sbr.rel (0) target = $region9
    $region8: #{tpu_custom_call.1} parent=1 // pred_region
      %s31 = ssub.s32 2048, 2048
      %32 = vsyncadd [#allocation3], %s31
      %s33 = sshll.u32 [#allocation2], 4
      %s34 = int_to_ptr.vmem [resolvable:$true] %s33
      %39 = dma.hbm_to_vmem [thread:$0]  %s1, 2048, %s34, [#allocation3], 64, 64, 4
    $region9: #{tpu_custom_call.1} parent=1 // pred_fallthru
      _
    // Predicated region
    $region10: #{tpu_custom_call.1} parent=1 // pred_check
      _
    $region11: #{tpu_custom_call.1} parent=1 // pred_check_branch
      %41 = sbr.rel (0) target = $region13
    $region12: #{tpu_custom_call.1} parent=1 // pred_region
      %s43 = ssub.s32 64, 64
      %44 = vsyncadd [#allocation6], %s43
      %s46 = sshll.u32 [#allocation5], 4
      %s47 = int_to_ptr.vmem [resolvable:$true] %s46
      %49 = dma.hbm_to_vmem [thread:$0]  %s2, 64, %s47, [#allocation6]
    $region13: #{tpu_custom_call.1} parent=1 // pred_fallthru
      _
    // Predicated region
    $region14: #{tpu_custom_call.1} parent=1 // pred_check
      _
    $region15: #{tpu_custom_call.1} parent=1 // pred_check_branch
      %51 = sbr.rel (0) target = $region17
    $region16: #{tpu_custom_call.1} parent=1 // pred_region
      _
    $region17: #{tpu_custom_call.1} parent=1 // pred_fallthru
      _
    // Predicated region
    $region18: #{tpu_custom_call.1} parent=1 // pred_check
      _
    $region19: #{tpu_custom_call.1} parent=1 // pred_check_branch
      %53 = sbr.rel (0) target = $region21
    $region20: #{tpu_custom_call.1} parent=1 // pred_region
      %s55 = ssub.s32 64, 64
      %56 = vsyncadd [#allocation6], %s55
      %s58 = sshll.u32 [#allocation7], 4
      %s59 = int_to_ptr.vmem [resolvable:$true] %s58
      %61 = dma.hbm_to_vmem [thread:$0]  %s4, 64, %s59, [#allocation6]
    $region21: #{tpu_custom_call.1} parent=1 // pred_fallthru
      _
    // Predicated region
    $region22: #{tpu_custom_call.1} parent=1 // pred_check
      _
    $region23: #{tpu_custom_call.1} parent=1 // pred_check_branch
      %63 = sbr.rel (0) target = $region25
    $region24: #{tpu_custom_call.1} parent=1 // pred_region
      _
    $region25: #{tpu_custom_call.1} parent=1 // pred_fallthru
      _
    // Predicated region
    $region26: #{tpu_custom_call.1} parent=1 // pred_check
      _
    $region27: #{tpu_custom_call.1} parent=1 // pred_check_branch
      %65 = sbr.rel (0) target = $region29
    $region28: #{tpu_custom_call.1} parent=1 // pred_region
      %s67 = ssub.s32 64, 64
      %68 = vsyncadd [#allocation9], %s67
      %s70 = sshll.u32 [#allocation8], 4
      %s71 = int_to_ptr.vmem [resolvable:$true] %s70
      %73 = dma.hbm_to_vmem [thread:$0]  %s6, 64, %s71, [#allocation9]
    $region29: #{tpu_custom_call.1} parent=1 // pred_fallthru
      _
    // Predicated region
    $region30: #{tpu_custom_call.1} parent=1 // pred_check
      _
    $region31: #{tpu_custom_call.1} parent=1 // pred_check_branch
      %75 = sbr.rel (0) target = $region33
    $region32: #{tpu_custom_call.1} parent=1 // pred_region
      %s77 = ssub.s32 256, 256
      %78 = vsyncadd [#allocation9], %s77
      %s79 = sshll.u32 [#allocation10], 4
      %s80 = int_to_ptr.vmem [resolvable:$true] %s79
      %85 = dma.hbm_to_vmem [thread:$0]  %s7, 256, %s80, [#allocation9], 64, 64, 4
    $region33: #{tpu_custom_call.1} parent=1 // pred_fallthru
      _
    // Predicated region
    $region34: #{tpu_custom_call.1} parent=1 // pred_check
      _
    $region35: #{tpu_custom_call.1} parent=1 // pred_check_branch
      %87 = sbr.rel (0) target = $region37
    $region36: #{tpu_custom_call.1} parent=1 // pred_region
      _
    $region37: #{tpu_custom_call.1} parent=1 // pred_fallthru
      _
    // Predicated region
    $region38: #{tpu_custom_call.1} parent=1 // pred_check
      _
    $region39: #{tpu_custom_call.1} parent=1 // pred_check_branch
      %89 = sbr.rel (0) target = $region41
    $region40: #{tpu_custom_call.1} parent=1 // pred_region
      %s91 = ssub.s32 1024, 1024
      %92 = vsyncadd [#allocation12], %s91
      %s93 = sshll.u32 [#allocation11], 4
      %s94 = int_to_ptr.vmem [resolvable:$true] %s93
      %99 = dma.hbm_to_vmem [thread:$0]  %s9, 1024, %s94, [#allocation12], 64, 64, 4
    $region41: #{tpu_custom_call.1} parent=1 // pred_fallthru
      _
    // Predicated region
    $region42: #{tpu_custom_call.1} parent=1 // pred_check
      _
    $region43: #{tpu_custom_call.1} parent=1 // pred_check_branch
      %101 = sbr.rel (0) target = $region45
    $region44: #{tpu_custom_call.1} parent=1 // pred_region
      _
    $region45: #{tpu_custom_call.1} parent=1 // pred_fallthru
      _
    // Predicated region
    $region46: #{tpu_custom_call.1} parent=1 // pred_check
      _
    $region47: #{tpu_custom_call.1} parent=1 // pred_check_branch
      %103 = sbr.rel (0) target = $region49
    $region48: #{tpu_custom_call.1} parent=1 // pred_region
      %s105 = ssub.s32 2048, 2048
      %106 = vsyncadd [#allocation12], %s105
      %s107 = sshll.u32 [#allocation13], 4
      %s108 = int_to_ptr.vmem [resolvable:$true] %s107
      %113 = dma.hbm_to_vmem [thread:$0]  %s11, 2048, %s108, [#allocation12], 128, 128, 8
    $region49: #{tpu_custom_call.1} parent=1 // pred_fallthru
      _
    // Predicated region
    $region50: #{tpu_custom_call.1} parent=1 // pred_check
      _
    $region51: #{tpu_custom_call.1} parent=1 // pred_check_branch
      %115 = sbr.rel (0) target = $region53
    $region52: #{tpu_custom_call.1} parent=1 // pred_region
      _
    $region53: #{tpu_custom_call.1} parent=1 // pred_fallthru
      _
    // Predicated region
    $region54: #{tpu_custom_call.1} parent=1 // pred_check
      _
    $region55: #{tpu_custom_call.1} parent=1 // pred_check_branch
      %117 = sbr.rel (0) target = $region57
    $region56: #{tpu_custom_call.1} parent=1 // pred_region
      %118 = dma.done [#allocation3], 2048
    $region57: #{tpu_custom_call.1} parent=1 // pred_fallthru
      _
    // Predicated region
    $region58: #{tpu_custom_call.1} parent=1 // pred_check
      _
    $region59: #{tpu_custom_call.1} parent=1 // pred_check_branch
      %120 = sbr.rel (0) target = $region61
    $region60: #{tpu_custom_call.1} parent=1 // pred_region
      %121 = dma.done [#allocation6], 64
    $region61: #{tpu_custom_call.1} parent=1 // pred_fallthru
      _
    // Predicated region
    $region62: #{tpu_custom_call.1} parent=1 // pred_check
      _
    $region63: #{tpu_custom_call.1} parent=1 // pred_check_branch
      %123 = sbr.rel (0) target = $region65
    $region64: #{tpu_custom_call.1} parent=1 // pred_region
      %124 = dma.done [#allocation6], 64
    $region65: #{tpu_custom_call.1} parent=1 // pred_fallthru
      _
    // Predicated region
    $region66: #{tpu_custom_call.1} parent=1 // pred_check
      _
    $region67: #{tpu_custom_call.1} parent=1 // pred_check_branch
      %126 = sbr.rel (0) target = $region69
    $region68: #{tpu_custom_call.1} parent=1 // pred_region
      %127 = dma.done [#allocation9], 64
    $region69: #{tpu_custom_call.1} parent=1 // pred_fallthru
      _
    // Predicated region
    $region70: #{tpu_custom_call.1} parent=1 // pred_check
      _
    $region71: #{tpu_custom_call.1} parent=1 // pred_check_branch
      %129 = sbr.rel (0) target = $region73
    $region72: #{tpu_custom_call.1} parent=1 // pred_region
      %130 = dma.done [#allocation9], 256
    $region73: #{tpu_custom_call.1} parent=1 // pred_fallthru
      _
    // Predicated region
    $region74: #{tpu_custom_call.1} parent=1 // pred_check
      _
    $region75: #{tpu_custom_call.1} parent=1 // pred_check_branch
      %132 = sbr.rel (0) target = $region77
    $region76: #{tpu_custom_call.1} parent=1 // pred_region
      %133 = dma.done [#allocation12], 1024
    $region77: #{tpu_custom_call.1} parent=1 // pred_fallthru
      _
    // Predicated region
    $region78: #{tpu_custom_call.1} parent=1 // pred_check
      _
    $region79: #{tpu_custom_call.1} parent=1 // pred_check_branch
      %135 = sbr.rel (0) target = $region81
    $region80: #{tpu_custom_call.1} parent=1 // pred_region
      %136 = dma.done [#allocation12], 2048
    $region81: #{tpu_custom_call.1} parent=1 // pred_fallthru
      _
    %v138 = vld [vmem:[%s0] sm:$0xff]
    %v139 = vld [vmem:[%s0 + $0x8] sm:$0xff]
    %v140 = vld [vmem:[#allocation5] sm:$0x7]
    %v141 = vpack.c.bf16 %v138, %v138
    %v142 = vpack.c.bf16 %v139, %v139
    %v143 = vld [vmem:[#allocation2] sm:$0xf]
    %v144 = vld [vmem:[#allocation2 + $0x4] sm:$0xf]
    %v145 = vld [vmem:[#allocation2 + $0x8] sm:$0xf]
    %v146 = vld [vmem:[#allocation2 + $0xc] sm:$0xf]
    %v147 = vld [vmem:[#allocation2 + $0x10] sm:$0xf]
    %v148 = vld [vmem:[#allocation2 + $0x14] sm:$0xf]
    %v149 = vld [vmem:[#allocation2 + $0x18] sm:$0xf]
    %v150 = vld [vmem:[#allocation2 + $0x1c] sm:$0xf]
    %v151 = vld [vmem:[#allocation2 + $0x20] sm:$0xf]
    %v152 = vld [vmem:[#allocation2 + $0x24] sm:$0xf]
    %v153 = vld [vmem:[#allocation2 + $0x28] sm:$0xf]
    %v154 = vld [vmem:[#allocation2 + $0x2c] sm:$0xf]
    %v155 = vld [vmem:[#allocation2 + $0x30] sm:$0xf]
    %v156 = vld [vmem:[#allocation2 + $0x34] sm:$0xf]
    %v157 = vld [vmem:[#allocation2 + $0x38] sm:$0xf]
    %v158 = vld [vmem:[#allocation2 + $0x3c] sm:$0xf]
    %v159 = vld [vmem:[#allocation2 + $0x40] sm:$0xf]
    %v160 = vld [vmem:[#allocation2 + $0x44] sm:$0xf]
    %v161 = vld [vmem:[#allocation2 + $0x48] sm:$0xf]
    %v162 = vld [vmem:[#allocation2 + $0x4c] sm:$0xf]
    %v163 = vld [vmem:[#allocation2 + $0x50] sm:$0xf]
    %v164 = vld [vmem:[#allocation2 + $0x54] sm:$0xf]
    %v165 = vld [vmem:[#allocation2 + $0x58] sm:$0xf]
    %v166 = vld [vmem:[#allocation2 + $0x5c] sm:$0xf]
    %v167 = vld [vmem:[#allocation2 + $0x60] sm:$0xf]
    %v168 = vld [vmem:[#allocation2 + $0x64] sm:$0xf]
    %v169 = vld [vmem:[#allocation2 + $0x68] sm:$0xf]
    %v170 = vld [vmem:[#allocation2 + $0x6c] sm:$0xf]
    %v171 = vld [vmem:[#allocation2 + $0x70] sm:$0xf]
    %v172 = vld [vmem:[#allocation2 + $0x74] sm:$0xf]
    %v173 = vld [vmem:[#allocation2 + $0x78] sm:$0xf]
    %v174 = vld [vmem:[#allocation2 + $0x7c] sm:$0xf]
    %v207 = vunpack.c.l.b16 %v143
    %v208 = vunpack.c.l.b16 %v144
    %v209 = vunpack.c.l.b16 %v145
    %v210 = vunpack.c.l.b16 %v146
    %v211 = vunpack.c.l.b16 %v147
    %v212 = vunpack.c.l.b16 %v148
    %v213 = vunpack.c.l.b16 %v149
    %v214 = vunpack.c.l.b16 %v150
    %v215 = vunpack.c.l.b16 %v151
    %v216 = vunpack.c.l.b16 %v152
    %v217 = vunpack.c.l.b16 %v153
    %v218 = vunpack.c.l.b16 %v154
    %v219 = vunpack.c.l.b16 %v155
    %v220 = vunpack.c.l.b16 %v156
    %v221 = vunpack.c.l.b16 %v157
    %v222 = vunpack.c.l.b16 %v158
    %v223 = vunpack.c.l.b16 %v159
    %v224 = vunpack.c.l.b16 %v160
    %v225 = vunpack.c.l.b16 %v161
    %v226 = vunpack.c.l.b16 %v162
    %v227 = vunpack.c.l.b16 %v163
    %v228 = vunpack.c.l.b16 %v164
    %v229 = vunpack.c.l.b16 %v165
    %v230 = vunpack.c.l.b16 %v166
    %v231 = vunpack.c.l.b16 %v167
    %v232 = vunpack.c.l.b16 %v168
    %v233 = vunpack.c.l.b16 %v169
    %v234 = vunpack.c.l.b16 %v170
    %v235 = vunpack.c.l.b16 %v171
    %v236 = vunpack.c.l.b16 %v172
    %v237 = vunpack.c.l.b16 %v173
    %v238 = vunpack.c.l.b16 %v174
    %v239 = vpack.c.b16 %v208, %v207
    %v240 = vpack.c.b16 %v210, %v209
    %v241 = vpack.c.b16 %v212, %v211
    %v242 = vpack.c.b16 %v214, %v213
    %v243 = vpack.c.b16 %v216, %v215
    %v244 = vpack.c.b16 %v218, %v217
    %v245 = vpack.c.b16 %v220, %v219
    %v246 = vpack.c.b16 %v222, %v221
    %v247 = vpack.c.b16 %v224, %v223
    %v248 = vpack.c.b16 %v226, %v225
    %v249 = vpack.c.b16 %v228, %v227
    %v250 = vpack.c.b16 %v230, %v229
    %v251 = vpack.c.b16 %v232, %v231
    %v252 = vpack.c.b16 %v234, %v233
    %v253 = vpack.c.b16 %v236, %v235
    %v254 = vpack.c.b16 %v238, %v237
    %271 = vmatprep.subr.bf16.mxu0 0
    %272 = vmatpush1.bf16.msra.mxu0 %v239
    %273 = vmatprep.subr.bf16.mxu0 0
    %274 = vmatpush1.bf16.msra.mxu0 %v240
    %275 = vmatprep.subr.bf16.mxu0 0
    %276 = vmatpush1.bf16.msra.mxu0 %v241
    %277 = vmatprep.subr.bf16.mxu0 0
    %278 = vmatpush1.bf16.msra.mxu0 %v242
    %279 = vmatprep.subr.bf16.mxu0 0
    %280 = vmatpush1.bf16.msra.mxu0 %v243
    %281 = vmatprep.subr.bf16.mxu0 0
    %282 = vmatpush1.bf16.msra.mxu0 %v244
    %283 = vmatprep.subr.bf16.mxu0 0
    %284 = vmatpush1.bf16.msra.mxu0 %v245
    %285 = vmatprep.subr.bf16.mxu0 0
    %286 = vmatpush1.bf16.msra.mxu0 %v246
    %287 = vmatprep.subr.bf16.mxu0 0
    %288 = vmatpush1.bf16.msra.mxu0 %v247
    %289 = vmatprep.subr.bf16.mxu0 0
    %290 = vmatpush1.bf16.msra.mxu0 %v248
    %291 = vmatprep.subr.bf16.mxu0 0
    %292 = vmatpush1.bf16.msra.mxu0 %v249
    %293 = vmatprep.subr.bf16.mxu0 0
    %294 = vmatpush1.bf16.msra.mxu0 %v250
    %295 = vmatprep.subr.bf16.mxu0 0
    %296 = vmatpush1.bf16.msra.mxu0 %v251
    %297 = vmatprep.subr.bf16.mxu0 0
    %298 = vmatpush1.bf16.msra.mxu0 %v252
    %299 = vmatprep.subr.bf16.mxu0 0
    %300 = vmatpush1.bf16.msra.mxu0 %v253
    %301 = vmatprep.subr.bf16.mxu0 0
    %302 = vmatpush1.bf16.msra.mxu0 %v254
    %303 = vmatprep.mubr.bf16.mxu0 %v142
    %304 = vmatmul.mubr.bf16.gmra.mrb[0].mxu0 %v141
    %v305 = vpop.f32.mrb[0].mxu0
    %v306 = vadd.f32 0.0, %v305
    %v307 = vpop.f32.mrb[0].mxu0
    %v308 = vpop.f32.mrb[0].mxu0
    %v309 = vpop.f32.mrb[0].mxu0
    %310 = vdwg.mxu0
    %v311 = vrot.slane %v306, 4
    %v312 = vadd.f32 %v306, %v311
    %v313 = vrot.slane %v312, 2
    %v314 = vadd.f32 %v312, %v313
    %v315 = vrot.slane %v314, 1
    %v316 = vadd.f32 %v314, %v315
    %v317 = vrcp.pop 8.0
    %v318 = vmul.f32 %v316, %v317
    %v319 = vsub.f32 %v306, %v318
    %v320 = vmul.f32 %v319, %v319
    %v321 = vrot.slane %v320, 4
    %v322 = vadd.f32 %v320, %v321
    %v323 = vrot.slane %v322, 2
    %v324 = vadd.f32 %v322, %v323
    %v325 = vrot.slane %v324, 1
    %v326 = vadd.f32 %v324, %v325
    %v327 = vmul.f32 %v326, %v317
    %v328 = vadd.f32 %v327, 1e-05
    %v329 = vrsqrt.pop %v328
    %v330 = vmul.f32 %v140, %v329
    %v331 = vmul.f32 %v318, %v330
    %v333 = vrot.slane %v331, 7
    %v335 = vsub.f32 %v140, %v333
    %v336 = vlaneseq
    %v337 = vshrl.u32 %v336, 7
    %v338 = vsub.s32 1, %v337
    %v339 = vrot.slane %v330, %v338
    %v340 = vmul.f32 %v306, %v339
    %v341 = vlaneseq
    %v342 = vshrl.u32 %v341, 7
    %v343 = vsub.s32 2, %v342
    %v344 = vrot.slane %v335, %v343
    %v345 = vadd.f32 %v340, %v344
    %v346 = vmax.f32 %v345, 0.0
    %v347 = vld [vmem:[#allocation7] sm:$0x7]
    %v348 = vpack.c.bf16 %v346, %v346
    %v349 = vld [vmem:[%s3] sm:$0xf]
    %v350 = vld [vmem:[%s3 + $0x4] sm:$0xf]
    %v351 = vld [vmem:[%s3 + $0x8] sm:$0xf]
    %v352 = vld [vmem:[%s3 + $0xc] sm:$0xf]
    %v353 = vld [vmem:[%s3 + $0x10] sm:$0xf]
    %v354 = vld [vmem:[%s3 + $0x14] sm:$0xf]
    %v355 = vld [vmem:[%s3 + $0x18] sm:$0xf]
    %v356 = vld [vmem:[%s3 + $0x1c] sm:$0xf]
    %v357 = vld [vmem:[%s3 + $0x20] sm:$0xf]
    %v358 = vld [vmem:[%s3 + $0x24] sm:$0xf]
    %v359 = vld [vmem:[%s3 + $0x28] sm:$0xf]
    %v360 = vld [vmem:[%s3 + $0x2c] sm:$0xf]
    %v361 = vld [vmem:[%s3 + $0x30] sm:$0xf]
    %v362 = vld [vmem:[%s3 + $0x34] sm:$0xf]
    %v363 = vld [vmem:[%s3 + $0x38] sm:$0xf]
    %v364 = vld [vmem:[%s3 + $0x3c] sm:$0xf]
    %v381 = vunpack.c.l.b16 %v349
    %v382 = vunpack.c.l.b16 %v350
    %v383 = vunpack.c.l.b16 %v351
    %v384 = vunpack.c.l.b16 %v352
    %v385 = vunpack.c.l.b16 %v353
    %v386 = vunpack.c.l.b16 %v354
    %v387 = vunpack.c.l.b16 %v355
    %v388 = vunpack.c.l.b16 %v356
    %v389 = vunpack.c.l.b16 %v357
    %v390 = vunpack.c.l.b16 %v358
    %v391 = vunpack.c.l.b16 %v359
    %v392 = vunpack.c.l.b16 %v360
    %v393 = vunpack.c.l.b16 %v361
    %v394 = vunpack.c.l.b16 %v362
    %v395 = vunpack.c.l.b16 %v363
    %v396 = vunpack.c.l.b16 %v364
    %v397 = vpack.c.b16 %v382, %v381
    %v398 = vpack.c.b16 %v384, %v383
    %v399 = vpack.c.b16 %v386, %v385
    %v400 = vpack.c.b16 %v388, %v387
    %v401 = vpack.c.b16 %v390, %v389
    %v402 = vpack.c.b16 %v392, %v391
    %v403 = vpack.c.b16 %v394, %v393
    %v404 = vpack.c.b16 %v396, %v395
    %413 = vmatprep.subr.bf16.mxu0 0
    %414 = vmatpush1.bf16.msra.mxu0 %v397
    %415 = vmatprep.subr.bf16.mxu0 0
    %416 = vmatpush1.bf16.msra.mxu0 %v398
    %417 = vmatprep.subr.bf16.mxu0 0
    %418 = vmatpush1.bf16.msra.mxu0 %v399
    %419 = vmatprep.subr.bf16.mxu0 0
    %420 = vmatpush1.bf16.msra.mxu0 %v400
    %421 = vmatprep.subr.bf16.mxu0 0
    %422 = vmatpush1.bf16.msra.mxu0 %v401
    %423 = vmatprep.subr.bf16.mxu0 0
    %424 = vmatpush1.bf16.msra.mxu0 %v402
    %425 = vmatprep.subr.bf16.mxu0 0
    %426 = vmatpush1.bf16.msra.mxu0 %v403
    %427 = vmatprep.subr.bf16.mxu0 0
    %428 = vmatpush1.bf16.msra.mxu0 %v404
    %429 = vmatprep.subr.bf16.mxu0 0
    %430 = vmatpush1.bf16.msra.mxu0 0
    %431 = vmatprep.subr.bf16.mxu0 0
    %432 = vmatpush1.bf16.msra.mxu0 0
    %433 = vmatprep.subr.bf16.mxu0 0
    %434 = vmatpush1.bf16.msra.mxu0 0
    %435 = vmatprep.subr.bf16.mxu0 0
    %436 = vmatpush1.bf16.msra.mxu0 0
    %437 = vmatprep.subr.bf16.mxu0 0
    %438 = vmatpush1.bf16.msra.mxu0 0
    %439 = vmatprep.subr.bf16.mxu0 0
    %440 = vmatpush1.bf16.msra.mxu0 0
    %441 = vmatprep.subr.bf16.mxu0 0
    %442 = vmatpush1.bf16.msra.mxu0 0
    %443 = vmatprep.subr.bf16.mxu0 0
    %444 = vmatpush1.bf16.msra.mxu0 0
    %445 = vmatprep.mubr.bf16.mxu0 0
    %446 = vmatmul.mubr.bf16.gmra.mrb[0].mxu0 %v348
    %v447 = vpop.f32.mrb[0].mxu0
    %v448 = vadd.f32 0.0, %v447
    %v449 = vpop.f32.mrb[0].mxu0
    %v450 = vpop.f32.mrb[0].mxu0
    %v451 = vpop.f32.mrb[0].mxu0
    %452 = vdwg.mxu0
    %v453 = vrot.slane %v448, 4
    %v454 = vadd.f32 %v448, %v453
    %v455 = vrot.slane %v454, 2
    %v456 = vadd.f32 %v454, %v455
    %v457 = vrot.slane %v456, 1
    %v458 = vadd.f32 %v456, %v457
    %v459 = vmul.f32 %v458, %v317
    %v460 = vsub.f32 %v448, %v459
    %v461 = vmul.f32 %v460, %v460
    %v462 = vrot.slane %v461, 4
    %v463 = vadd.f32 %v461, %v462
    %v464 = vrot.slane %v463, 2
    %v465 = vadd.f32 %v463, %v464
    %v466 = vrot.slane %v465, 1
    %v467 = vadd.f32 %v465, %v466
    %v468 = vmul.f32 %v467, %v317
    %v469 = vadd.f32 %v468, 1e-05
    %v470 = vrsqrt.pop %v469
    %v471 = vmul.f32 %v347, %v470
    %v472 = vmul.f32 %v459, %v471
    %v474 = vrot.slane %v472, 7
    %v476 = vsub.f32 %v347, %v474
    %v477 = vlaneseq
    %v478 = vshrl.u32 %v477, 7
    %v479 = vsub.s32 1, %v478
    %v480 = vrot.slane %v471, %v479
    %v481 = vmul.f32 %v448, %v480
    %v482 = vlaneseq
    %v483 = vshrl.u32 %v482, 7
    %v484 = vsub.s32 2, %v483
    %v485 = vrot.slane %v476, %v484
    %v486 = vadd.f32 %v481, %v485
    %v487 = vmax.f32 %v486, 0.0
    %v488 = vld [vmem:[#allocation8] sm:$0x7]
    %v489 = vpack.c.bf16 %v487, %v487
    %v490 = vld [vmem:[%s5] sm:$0xf]
    %v491 = vld [vmem:[%s5 + $0x4] sm:$0xf]
    %v492 = vld [vmem:[%s5 + $0x8] sm:$0xf]
    %v493 = vld [vmem:[%s5 + $0xc] sm:$0xf]
    %v494 = vld [vmem:[%s5 + $0x10] sm:$0xf]
    %v495 = vld [vmem:[%s5 + $0x14] sm:$0xf]
    %v496 = vld [vmem:[%s5 + $0x18] sm:$0xf]
    %v497 = vld [vmem:[%s5 + $0x1c] sm:$0xf]
    %v498 = vld [vmem:[%s5 + $0x20] sm:$0xf]
    %v499 = vld [vmem:[%s5 + $0x24] sm:$0xf]
    %v500 = vld [vmem:[%s5 + $0x28] sm:$0xf]
    %v501 = vld [vmem:[%s5 + $0x2c] sm:$0xf]
    %v502 = vld [vmem:[%s5 + $0x30] sm:$0xf]
    %v503 = vld [vmem:[%s5 + $0x34] sm:$0xf]
    %v504 = vld [vmem:[%s5 + $0x38] sm:$0xf]
    %v505 = vld [vmem:[%s5 + $0x3c] sm:$0xf]
    %v506 = vlaneseq
    %v507 = vshrl.u32 %v506, 7
    %v508 = vsub.s32 0, %v507
    %v509 = vrot.slane %v488, %v508
    %v526 = vunpack.c.l.b16 %v490
    %v527 = vunpack.c.l.b16 %v491
    %v528 = vunpack.c.l.b16 %v492
    %v529 = vunpack.c.l.b16 %v493
    %v530 = vunpack.c.l.b16 %v494
    %v531 = vunpack.c.l.b16 %v495
    %v532 = vunpack.c.l.b16 %v496
    %v533 = vunpack.c.l.b16 %v497
    %v534 = vunpack.c.l.b16 %v498
    %v535 = vunpack.c.l.b16 %v499
    %v536 = vunpack.c.l.b16 %v500
    %v537 = vunpack.c.l.b16 %v501
    %v538 = vunpack.c.l.b16 %v502
    %v539 = vunpack.c.l.b16 %v503
    %v540 = vunpack.c.l.b16 %v504
    %v541 = vunpack.c.l.b16 %v505
    %v542 = vpack.c.b16 %v527, %v526
    %v543 = vpack.c.b16 %v529, %v528
    %v544 = vpack.c.b16 %v531, %v530
    %v545 = vpack.c.b16 %v533, %v532
    %v546 = vpack.c.b16 %v535, %v534
    %v547 = vpack.c.b16 %v537, %v536
    %v548 = vpack.c.b16 %v539, %v538
    %v549 = vpack.c.b16 %v541, %v540
    %558 = vmatprep.subr.bf16.mxu0 0
    %559 = vmatpush1.bf16.msra.mxu0 %v542
    %560 = vmatprep.subr.bf16.mxu0 0
    %561 = vmatpush1.bf16.msra.mxu0 %v543
    %562 = vmatprep.subr.bf16.mxu0 0
    %563 = vmatpush1.bf16.msra.mxu0 %v544
    %564 = vmatprep.subr.bf16.mxu0 0
    %565 = vmatpush1.bf16.msra.mxu0 %v545
    %566 = vmatprep.subr.bf16.mxu0 0
    %567 = vmatpush1.bf16.msra.mxu0 %v546
    %568 = vmatprep.subr.bf16.mxu0 0
    %569 = vmatpush1.bf16.msra.mxu0 %v547
    %570 = vmatprep.subr.bf16.mxu0 0
    %571 = vmatpush1.bf16.msra.mxu0 %v548
    %572 = vmatprep.subr.bf16.mxu0 0
    %573 = vmatpush1.bf16.msra.mxu0 %v549
    %574 = vmatprep.subr.bf16.mxu0 0
    %575 = vmatpush1.bf16.msra.mxu0 0
    %576 = vmatprep.subr.bf16.mxu0 0
    %577 = vmatpush1.bf16.msra.mxu0 0
    %578 = vmatprep.subr.bf16.mxu0 0
    %579 = vmatpush1.bf16.msra.mxu0 0
    %580 = vmatprep.subr.bf16.mxu0 0
    %581 = vmatpush1.bf16.msra.mxu0 0
    %582 = vmatprep.subr.bf16.mxu0 0
    %583 = vmatpush1.bf16.msra.mxu0 0
    %584 = vmatprep.subr.bf16.mxu0 0
    %585 = vmatpush1.bf16.msra.mxu0 0
    %586 = vmatprep.subr.bf16.mxu0 0
    %587 = vmatpush1.bf16.msra.mxu0 0
    %588 = vmatprep.subr.bf16.mxu0 0
    %589 = vmatpush1.bf16.msra.mxu0 0
    %590 = vmatprep.mubr.bf16.mxu0 0
    %591 = vmatmul.mubr.bf16.gmra.mrb[0].mxu0 %v489
    %v592 = vpop.f32.mrb[0].mxu0
    %v593 = vadd.f32 %v509, %v592
    %v594 = vpop.f32.mrb[0].mxu0
    %v595 = vpop.f32.mrb[0].mxu0
    %v596 = vpop.f32.mrb[0].mxu0
    %597 = vdwg.mxu0
    %v598 = vxor.u32 %v593, 2147483648
    %v599 = vmul.f32 %v598, 1.442695
    %v600 = vpow.pop %v599
    %v601 = vadd.f32 %v600, 1.0
    %v602 = vrcp.pop %v601
    %v603 = vmul.f32 1.0, %v602
    %vm604 = vcmask 261120
    %605 = vst.msk [vmem:[#allocation14] sm:$0xff] %vm604, %v603
    %v606 = vld [vmem:[%s8] sm:$0x7]
    %v607 = vpack.c.bf16 %v603, %v603
    %v608 = vld [vmem:[#allocation10] sm:$0xf]
    %v609 = vld [vmem:[#allocation10 + $0x4] sm:$0xf]
    %v610 = vld [vmem:[#allocation10 + $0x8] sm:$0xf]
    %v611 = vld [vmem:[#allocation10 + $0xc] sm:$0xf]
    %v616 = vunpack.c.l.b16 %v608
    %v617 = vunpack.c.l.b16 %v609
    %v618 = vunpack.c.l.b16 %v610
    %v619 = vunpack.c.l.b16 %v611
    %v620 = vpack.c.b16 %v617, %v616
    %v621 = vpack.c.b16 %v619, %v618
    %v625 = vsel %vm604, %v607, 0
    %627 = vmatprep.subr.bf16.mxu0 0
    %628 = vmatpush1.bf16.msra.mxu0 %v620
    %629 = vmatprep.subr.bf16.mxu0 0
    %630 = vmatpush1.bf16.msra.mxu0 %v621
    %631 = vmatprep.subr.bf16.mxu0 0
    %632 = vmatpush1.bf16.msra.mxu0 0
    %633 = vmatprep.subr.bf16.mxu0 0
    %634 = vmatpush1.bf16.msra.mxu0 0
    %635 = vmatprep.subr.bf16.mxu0 0
    %636 = vmatpush1.bf16.msra.mxu0 0
    %637 = vmatprep.subr.bf16.mxu0 0
    %638 = vmatpush1.bf16.msra.mxu0 0
    %639 = vmatprep.subr.bf16.mxu0 0
    %640 = vmatpush1.bf16.msra.mxu0 0
    %641 = vmatprep.subr.bf16.mxu0 0
    %642 = vmatpush1.bf16.msra.mxu0 0
    %643 = vmatprep.subr.bf16.mxu0 0
    %644 = vmatpush1.bf16.msra.mxu0 0
    %645 = vmatprep.subr.bf16.mxu0 0
    %646 = vmatpush1.bf16.msra.mxu0 0
    %647 = vmatprep.subr.bf16.mxu0 0
    %648 = vmatpush1.bf16.msra.mxu0 0
    %649 = vmatprep.subr.bf16.mxu0 0
    %650 = vmatpush1.bf16.msra.mxu0 0
    %651 = vmatprep.subr.bf16.mxu0 0
    %652 = vmatpush1.bf16.msra.mxu0 0
    %653 = vmatprep.subr.bf16.mxu0 0
    %654 = vmatpush1.bf16.msra.mxu0 0
    %655 = vmatprep.subr.bf16.mxu0 0
    %656 = vmatpush1.bf16.msra.mxu0 0
    %657 = vmatprep.subr.bf16.mxu0 0
    %658 = vmatpush1.bf16.msra.mxu0 0
    %659 = vmatprep.mubr.bf16.mxu0 0
    %660 = vmatmul.mubr.bf16.gmra.mrb[0].mxu0 %v625
    %v661 = vpop.f32.mrb[0].mxu0
    %v662 = vadd.f32 0.0, %v661
    %v663 = vpop.f32.mrb[0].mxu0
    %v664 = vpop.f32.mrb[0].mxu0
    %v665 = vpop.f32.mrb[0].mxu0
    %666 = vdwg.mxu0
    %v667 = vrot.slane %v662, 4
    %v668 = vadd.f32 %v662, %v667
    %v669 = vrot.slane %v668, 2
    %v670 = vadd.f32 %v668, %v669
    %v671 = vrot.slane %v670, 1
    %v672 = vadd.f32 %v670, %v671
    %v673 = vmul.f32 %v672, %v317
    %v674 = vsub.f32 %v662, %v673
    %v675 = vmul.f32 %v674, %v674
    %v676 = vrot.slane %v675, 4
    %v677 = vadd.f32 %v675, %v676
    %v678 = vrot.slane %v677, 2
    %v679 = vadd.f32 %v677, %v678
    %v680 = vrot.slane %v679, 1
    %v681 = vadd.f32 %v679, %v680
    %v682 = vmul.f32 %v681, %v317
    %v683 = vadd.f32 %v682, 1e-05
    %v684 = vrsqrt.pop %v683
    %v685 = vmul.f32 %v606, %v684
    %v686 = vmul.f32 %v673, %v685
    %v688 = vrot.slane %v686, 7
    %v690 = vsub.f32 %v606, %v688
    %v691 = vlaneseq
    %v692 = vshrl.u32 %v691, 7
    %v693 = vsub.s32 1, %v692
    %v694 = vrot.slane %v685, %v693
    %v695 = vmul.f32 %v662, %v694
    %v696 = vlaneseq
    %v697 = vshrl.u32 %v696, 7
    %v698 = vsub.s32 2, %v697
    %v699 = vrot.slane %v690, %v698
    %v700 = vadd.f32 %v695, %v699
    %v701 = vmax.f32 %v700, 0.0
    %v702 = vld [vmem:[%s10] sm:$0x7]
    %v703 = vpack.c.bf16 %v701, %v701
    %v704 = vld [vmem:[#allocation11] sm:$0xf]
    %v705 = vld [vmem:[#allocation11 + $0x4] sm:$0xf]
    %v706 = vld [vmem:[#allocation11 + $0x8] sm:$0xf]
    %v707 = vld [vmem:[#allocation11 + $0xc] sm:$0xf]
    %v708 = vld [vmem:[#allocation11 + $0x10] sm:$0xf]
    %v709 = vld [vmem:[#allocation11 + $0x14] sm:$0xf]
    %v710 = vld [vmem:[#allocation11 + $0x18] sm:$0xf]
    %v711 = vld [vmem:[#allocation11 + $0x1c] sm:$0xf]
    %v712 = vld [vmem:[#allocation11 + $0x20] sm:$0xf]
    %v713 = vld [vmem:[#allocation11 + $0x24] sm:$0xf]
    %v714 = vld [vmem:[#allocation11 + $0x28] sm:$0xf]
    %v715 = vld [vmem:[#allocation11 + $0x2c] sm:$0xf]
    %v716 = vld [vmem:[#allocation11 + $0x30] sm:$0xf]
    %v717 = vld [vmem:[#allocation11 + $0x34] sm:$0xf]
    %v718 = vld [vmem:[#allocation11 + $0x38] sm:$0xf]
    %v719 = vld [vmem:[#allocation11 + $0x3c] sm:$0xf]
    %v736 = vunpack.c.l.b16 %v704
    %v737 = vunpack.c.l.b16 %v705
    %v738 = vunpack.c.l.b16 %v706
    %v739 = vunpack.c.l.b16 %v707
    %v740 = vunpack.c.l.b16 %v708
    %v741 = vunpack.c.l.b16 %v709
    %v742 = vunpack.c.l.b16 %v710
    %v743 = vunpack.c.l.b16 %v711
    %v744 = vunpack.c.l.b16 %v712
    %v745 = vunpack.c.l.b16 %v713
    %v746 = vunpack.c.l.b16 %v714
    %v747 = vunpack.c.l.b16 %v715
    %v748 = vunpack.c.l.b16 %v716
    %v749 = vunpack.c.l.b16 %v717
    %v750 = vunpack.c.l.b16 %v718
    %v751 = vunpack.c.l.b16 %v719
    %v752 = vpack.c.b16 %v737, %v736
    %v753 = vpack.c.b16 %v739, %v738
    %v754 = vpack.c.b16 %v741, %v740
    %v755 = vpack.c.b16 %v743, %v742
    %v756 = vpack.c.b16 %v745, %v744
    %v757 = vpack.c.b16 %v747, %v746
    %v758 = vpack.c.b16 %v749, %v748
    %v759 = vpack.c.b16 %v751, %v750
    %768 = vmatprep.subr.bf16.mxu0 0
    %769 = vmatpush1.bf16.msra.mxu0 %v752
    %770 = vmatprep.subr.bf16.mxu0 0
    %771 = vmatpush1.bf16.msra.mxu0 %v753
    %772 = vmatprep.subr.bf16.mxu0 0
    %773 = vmatpush1.bf16.msra.mxu0 %v754
    %774 = vmatprep.subr.bf16.mxu0 0
    %775 = vmatpush1.bf16.msra.mxu0 %v755
    %776 = vmatprep.subr.bf16.mxu0 0
    %777 = vmatpush1.bf16.msra.mxu0 %v756
    %778 = vmatprep.subr.bf16.mxu0 0
    %779 = vmatpush1.bf16.msra.mxu0 %v757
    %780 = vmatprep.subr.bf16.mxu0 0
    %781 = vmatpush1.bf16.msra.mxu0 %v758
    %782 = vmatprep.subr.bf16.mxu0 0
    %783 = vmatpush1.bf16.msra.mxu0 %v759
    %784 = vmatprep.subr.bf16.mxu0 0
    %785 = vmatpush1.bf16.msra.mxu0 0
    %786 = vmatprep.subr.bf16.mxu0 0
    %787 = vmatpush1.bf16.msra.mxu0 0
    %788 = vmatprep.subr.bf16.mxu0 0
    %789 = vmatpush1.bf16.msra.mxu0 0
    %790 = vmatprep.subr.bf16.mxu0 0
    %791 = vmatpush1.bf16.msra.mxu0 0
    %792 = vmatprep.subr.bf16.mxu0 0
    %793 = vmatpush1.bf16.msra.mxu0 0
    %794 = vmatprep.subr.bf16.mxu0 0
    %795 = vmatpush1.bf16.msra.mxu0 0
    %796 = vmatprep.subr.bf16.mxu0 0
    %797 = vmatpush1.bf16.msra.mxu0 0
    %798 = vmatprep.subr.bf16.mxu0 0
    %799 = vmatpush1.bf16.msra.mxu0 0
    %800 = vmatprep.mubr.bf16.mxu0 0
    %801 = vmatmul.mubr.bf16.gmra.mrb[0].mxu0 %v703
    %v802 = vpop.f32.mrb[0].mxu0
    %v803 = vadd.f32 0.0, %v802
    %v804 = vpop.f32.mrb[0].mxu0
    %v805 = vpop.f32.mrb[0].mxu0
    %v806 = vpop.f32.mrb[0].mxu0
    %807 = vdwg.mxu0
    %v808 = vrot.slane %v803, 4
    %v809 = vadd.f32 %v803, %v808
    %v810 = vrot.slane %v809, 2
    %v811 = vadd.f32 %v809, %v810
    %v812 = vrot.slane %v811, 1
    %v813 = vadd.f32 %v811, %v812
    %v814 = vmul.f32 %v813, %v317
    %v815 = vsub.f32 %v803, %v814
    %v816 = vmul.f32 %v815, %v815
    %v817 = vrot.slane %v816, 4
    %v818 = vadd.f32 %v816, %v817
    %v819 = vrot.slane %v818, 2
    %v820 = vadd.f32 %v818, %v819
    %v821 = vrot.slane %v820, 1
    %v822 = vadd.f32 %v820, %v821
    %v823 = vmul.f32 %v822, %v317
    %v824 = vadd.f32 %v823, 1e-05
    %v825 = vrsqrt.pop %v824
    %v826 = vmul.f32 %v702, %v825
    %v827 = vmul.f32 %v814, %v826
    %v829 = vrot.slane %v827, 7
    %v831 = vsub.f32 %v702, %v829
    %v832 = vlaneseq
    %v833 = vshrl.u32 %v832, 7
    %v834 = vsub.s32 1, %v833
    %v835 = vrot.slane %v826, %v834
    %v836 = vmul.f32 %v803, %v835
    %v837 = vlaneseq
    %v838 = vshrl.u32 %v837, 7
    %v839 = vsub.s32 2, %v838
    %v840 = vrot.slane %v831, %v839
    %v841 = vadd.f32 %v836, %v840
    %v842 = vmax.f32 %v841, 0.0
    %v843 = vld [vmem:[%s12] sm:$0x77]
    %v844 = vpack.c.bf16 %v842, %v842
    %v845 = vld [vmem:[#allocation13] sm:$0xff]
    %v846 = vld [vmem:[#allocation13 + $0x8] sm:$0xff]
    %v847 = vld [vmem:[#allocation13 + $0x10] sm:$0xff]
    %v848 = vld [vmem:[#allocation13 + $0x18] sm:$0xff]
    %v849 = vld [vmem:[#allocation13 + $0x20] sm:$0xff]
    %v850 = vld [vmem:[#allocation13 + $0x28] sm:$0xff]
    %v851 = vld [vmem:[#allocation13 + $0x30] sm:$0xff]
    %v852 = vld [vmem:[#allocation13 + $0x38] sm:$0xff]
    %v853 = vld [vmem:[#allocation13 + $0x40] sm:$0xff]
    %v854 = vld [vmem:[#allocation13 + $0x48] sm:$0xff]
    %v855 = vld [vmem:[#allocation13 + $0x50] sm:$0xff]
    %v856 = vld [vmem:[#allocation13 + $0x58] sm:$0xff]
    %v857 = vld [vmem:[#allocation13 + $0x60] sm:$0xff]
    %v858 = vld [vmem:[#allocation13 + $0x68] sm:$0xff]
    %v859 = vld [vmem:[#allocation13 + $0x70] sm:$0xff]
    %v860 = vld [vmem:[#allocation13 + $0x78] sm:$0xff]
    %v862 = vlaneseq
    %v863 = vshrl.u32 %v862, 7
    %v864 = vsub.s32 0, %v863
    %v865 = vrot.slane %v843, %v864
    %v866 = vlaneseq
    %v867 = vshrl.u32 %v866, 7
    %v868 = vsub.s32 4, %v867
    %v869 = vrot.slane %v843, %v868
    %v872 = vlaneseq
    %v873 = vshrl.u32 %v872, 7
    %v874 = vsub.s32 0, %v873
    %v875 = vrot.slane %v865, %v874
    %v876 = vlaneseq
    %v877 = vshrl.u32 %v876, 7
    %v878 = vsub.s32 0, %v877
    %v879 = vrot.slane %v869, %v878
    %v896 = vunpack.c.l.b16 %v845
    %v897 = vunpack.c.h.b16 %v845
    %v898 = vunpack.c.l.b16 %v846
    %v899 = vunpack.c.h.b16 %v846
    %v900 = vunpack.c.l.b16 %v847
    %v901 = vunpack.c.h.b16 %v847
    %v902 = vunpack.c.l.b16 %v848
    %v903 = vunpack.c.h.b16 %v848
    %v904 = vunpack.c.l.b16 %v849
    %v905 = vunpack.c.h.b16 %v849
    %v906 = vunpack.c.l.b16 %v850
    %v907 = vunpack.c.h.b16 %v850
    %v908 = vunpack.c.l.b16 %v851
    %v909 = vunpack.c.h.b16 %v851
    %v910 = vunpack.c.l.b16 %v852
    %v911 = vunpack.c.h.b16 %v852
    %v912 = vunpack.c.l.b16 %v853
    %v913 = vunpack.c.h.b16 %v853
    %v914 = vunpack.c.l.b16 %v854
    %v915 = vunpack.c.h.b16 %v854
    %v916 = vunpack.c.l.b16 %v855
    %v917 = vunpack.c.h.b16 %v855
    %v918 = vunpack.c.l.b16 %v856
    %v919 = vunpack.c.h.b16 %v856
    %v920 = vunpack.c.l.b16 %v857
    %v921 = vunpack.c.h.b16 %v857
    %v922 = vunpack.c.l.b16 %v858
    %v923 = vunpack.c.h.b16 %v858
    %v924 = vunpack.c.l.b16 %v859
    %v925 = vunpack.c.h.b16 %v859
    %v926 = vunpack.c.l.b16 %v860
    %v927 = vunpack.c.h.b16 %v860
    %v928 = vpack.c.b16 %v898, %v896
    %v929 = vpack.c.b16 %v899, %v897
    %v930 = vpack.c.b16 %v902, %v900
    %v931 = vpack.c.b16 %v903, %v901
    %v932 = vpack.c.b16 %v906, %v904
    %v933 = vpack.c.b16 %v907, %v905
    %v934 = vpack.c.b16 %v910, %v908
    %v935 = vpack.c.b16 %v911, %v909
    %v936 = vpack.c.b16 %v914, %v912
    %v937 = vpack.c.b16 %v915, %v913
    %v938 = vpack.c.b16 %v918, %v916
    %v939 = vpack.c.b16 %v919, %v917
    %v940 = vpack.c.b16 %v922, %v920
    %v941 = vpack.c.b16 %v923, %v921
    %v942 = vpack.c.b16 %v926, %v924
    %v943 = vpack.c.b16 %v927, %v925
    %960 = vmatprep.subr.bf16.mxu0 %v929
    %961 = vmatpush1.bf16.msra.mxu0 %v928
    %962 = vmatprep.subr.bf16.mxu0 %v931
    %963 = vmatpush1.bf16.msra.mxu0 %v930
    %964 = vmatprep.subr.bf16.mxu0 %v933
    %965 = vmatpush1.bf16.msra.mxu0 %v932
    %966 = vmatprep.subr.bf16.mxu0 %v935
    %967 = vmatpush1.bf16.msra.mxu0 %v934
    %968 = vmatprep.subr.bf16.mxu0 %v937
    %969 = vmatpush1.bf16.msra.mxu0 %v936
    %970 = vmatprep.subr.bf16.mxu0 %v939
    %971 = vmatpush1.bf16.msra.mxu0 %v938
    %972 = vmatprep.subr.bf16.mxu0 %v941
    %973 = vmatpush1.bf16.msra.mxu0 %v940
    %974 = vmatprep.subr.bf16.mxu0 %v943
    %975 = vmatpush1.bf16.msra.mxu0 %v942
    %976 = vmatprep.subr.bf16.mxu0 0
    %977 = vmatpush1.bf16.msra.mxu0 0
    %978 = vmatprep.subr.bf16.mxu0 0
    %979 = vmatpush1.bf16.msra.mxu0 0
    %980 = vmatprep.subr.bf16.mxu0 0
    %981 = vmatpush1.bf16.msra.mxu0 0
    %982 = vmatprep.subr.bf16.mxu0 0
    %983 = vmatpush1.bf16.msra.mxu0 0
    %984 = vmatprep.subr.bf16.mxu0 0
    %985 = vmatpush1.bf16.msra.mxu0 0
    %986 = vmatprep.subr.bf16.mxu0 0
    %987 = vmatpush1.bf16.msra.mxu0 0
    %988 = vmatprep.subr.bf16.mxu0 0
    %989 = vmatpush1.bf16.msra.mxu0 0
    %990 = vmatprep.subr.bf16.mxu0 0
    %991 = vmatpush1.bf16.msra.mxu0 0
    %992 = vmatprep.mubr.bf16.mxu0 0
    %993 = vmatmul.mubr.bf16.gmra.mrb[0].mxu0 %v844
    %v994 = vpop.f32.mrb[0].mxu0
    %v995 = vadd.f32 %v875, %v994
    %v996 = vpop.f32.mrb[0].mxu0
    %v997 = vadd.f32 %v879, %v996
    %v998 = vpop.f32.mrb[0].mxu0
    %v999 = vpop.f32.mrb[0].mxu0
    %1000 = vdwg.mxu0
    %v1001 = vxor.u32 %v995, 2147483648
    %v1002 = vxor.u32 %v997, 2147483648
    %v1003 = vmul.f32 %v1001, 1.442695
    %v1004 = vpow.pop %v1003
    %v1005 = vmul.f32 %v1002, 1.442695
    %v1006 = vpow.pop %v1005
    %v1007 = vadd.f32 %v1004, 1.0
    %v1008 = vadd.f32 %v1006, 1.0
    %v1009 = vrcp.pop %v1007
    %v1010 = vmul.f32 1.0, %v1009
    %v1011 = vrcp.pop %v1008
    %v1012 = vmul.f32 1.0, %v1011
    %1013 = vst [vmem:[#allocation15] sm:$0xff] %v1010
    %1014 = vst [vmem:[#allocation15 + $0x8] sm:$0xff] %v1012
    // Predicated region
    $region82: #{tpu_custom_call.1} parent=1 // pred_check
      _
    $region83: #{tpu_custom_call.1} parent=1 // pred_check_branch
      %1016 = sbr.rel (0) target = $region85
    $region84: #{tpu_custom_call.1} parent=1 // pred_region
      %s1018 = ssub.s32 128, 128
      %1019 = vsyncadd [#allocation4], %s1018
      %s1021 = sshll.u32 [#allocation14], 4
      %s1022 = int_to_ptr.vmem [resolvable:$true] %s1021
      %1024 = dma.vmem_to_hbm [thread:$0]  %s1022, 128, %s13, [#allocation4]
    $region85: #{tpu_custom_call.1} parent=1 // pred_fallthru
      _
    // Predicated region
    $region86: #{tpu_custom_call.1} parent=1 // pred_check
      _
    $region87: #{tpu_custom_call.1} parent=1 // pred_check_branch
      %1026 = sbr.rel (0) target = $region89
    $region88: #{tpu_custom_call.1} parent=1 // pred_region
      %s1028 = ssub.s32 256, 256
      %1029 = vsyncadd [#allocation16], %s1028
      %s1031 = sshll.u32 [#allocation15], 4
      %s1032 = int_to_ptr.vmem [resolvable:$true] %s1031
      %1034 = dma.vmem_to_hbm [thread:$0]  %s1032, 256, %s14, [#allocation16]
    $region89: #{tpu_custom_call.1} parent=1 // pred_fallthru
      _
    // Predicated region
    $region90: #{tpu_custom_call.1} parent=1 // pred_check
      _
    $region91: #{tpu_custom_call.1} parent=1 // pred_check_branch
      %1036 = sbr.rel (0) target = $region93
    $region92: #{tpu_custom_call.1} parent=1 // pred_region
      %1037 = dma.done [#allocation4], 128
    $region93: #{tpu_custom_call.1} parent=1 // pred_fallthru
      _
    // Predicated region
    $region94: #{tpu_custom_call.1} parent=1 // pred_check
      _
    $region95: #{tpu_custom_call.1} parent=1 // pred_check_branch
      %1039 = sbr.rel (0) target = $region97
    $region96: #{tpu_custom_call.1} parent=1 // pred_region
      %1040 = dma.done [#allocation16], 256
    $region97: #{tpu_custom_call.1} parent=1 // pred_fallthru
      _
    %1041 = vsyncpa [#allocation3], 1
    %1042 = vsyncpa [#allocation6], 1
    %1043 = vsyncpa [#allocation9], 1
    %1044 = vsyncpa [#allocation12], 1
    %1045 = vsyncpa [#allocation4], 1
    %1046 = vsyncpa [#allocation16], 1

</llo_original>
